<compile_context>
chip_gen: v5e
topology: v5e:2x2
jax: 0.10.0
libtpu: 0.0.40
codegen_flags: <defaults>
</compile_context>

<pallas_src>
import jax
import jax.numpy as jnp
from jax import lax
from jax.experimental import pallas as pl
from jax.experimental.pallas import tpu as pltpu

LANES = 128
# 4096 rows * 128 lanes * 4 B = 2 MiB per f32 tile per input; double-buffered
# for 2 inputs = 8 MiB -> fits v5e's scoped VMEM (with the explicit 32 MiB
# limit below), and leaves plenty of headroom on v6e (128 MiB) / v7x (64 MiB).
MAX_BLOCK_ROWS = 4096


def _choose_block_rows(rows_needed):
    """Pick a block row count: large tiles, >=2 blocks when possible, mult of 8."""
    if rows_needed <= 8:
        return rows_needed                       # full-dim block, single step
    # Aim for at least 2 grid steps (v7x has 2 TensorCores on the parallel axis)
    target = min(MAX_BLOCK_ROWS, pl.cdiv(rows_needed, 2))
    block_rows = ((target + 7) // 8) * 8         # sublane (8) tiling constraint
    return min(block_rows, MAX_BLOCK_ROWS)


def _make_kernel(n_valid, block_rows, needs_mask):
    block_elems = block_rows * LANES

    def _partials(p, t):
        inter = jnp.sum(p * t, axis=0, keepdims=True)    # (1, 128)
        ps = jnp.sum(p, axis=0, keepdims=True)
        ts = jnp.sum(t, axis=0, keepdims=True)
        return jnp.concatenate([inter, ps, ts], axis=0)  # (3, 128), one store

    def kernel(x_ref, t_ref, o_ref):
        x = x_ref[...].astype(jnp.float32)
        t = t_ref[...].astype(jnp.float32)
        # sigmoid(x) == 0.5*tanh(0.5*x) + 0.5 : one EUP op + 3 VALU ops,
        # exact for all finite x (cheaper than exp + f32 divide).
        p = 0.5 * jnp.tanh(0.5 * x) + 0.5

        if not needs_mask:
            # Every block is fully valid -> no mask work anywhere.
            o_ref[0] = _partials(p, t)
        else:
            i = pl.program_id(0)
            is_last = i == pl.num_programs(0) - 1

            @pl.when(jnp.logical_not(is_last))
            def _():
                o_ref[0] = _partials(p, t)

            @pl.when(is_last)
            def _():
                # Mask out elements past the (static) valid count.  Use
                # jnp.where (select), not multiply, so undefined values in the
                # ragged out-of-bounds tail of the last block can never leak
                # (even if they happen to be NaN/inf).
                row = lax.broadcasted_iota(jnp.int32, p.shape, 0)
                lane = lax.broadcasted_iota(jnp.int32, p.shape, 1)
                elem = i * block_elems + row * LANES + lane
                valid = elem < n_valid
                pm = jnp.where(valid, p, 0.0)
                tm = jnp.where(valid, t, 0.0)
                o_ref[0] = _partials(pm, tm)

    return kernel


def dice_loss(inputs, targets, smooth=1.0):
    assert inputs.shape == targets.shape
    n = inputs.size

    x = inputs.reshape(-1)
    t = targets.reshape(-1)

    rows_needed = pl.cdiv(n, LANES)
    n_lane_padded = rows_needed * LANES
    if n_lane_padded != n:
        # Only the sub-128-element tail is ever padded (< 128 elements); the
        # padded values are excluded by the in-kernel mask anyway.
        x = jnp.pad(x, (0, n_lane_padded - n))
        t = jnp.pad(t, (0, n_lane_padded - n))
    x2 = x.reshape(rows_needed, LANES)
    t2 = t.reshape(rows_needed, LANES)

    block_rows = _choose_block_rows(rows_needed)
    num_blocks = pl.cdiv(rows_needed, block_rows)
    # Masking is needed only if the grid over-covers the true element count
    # (ragged last block and/or sub-128 tail).
    needs_mask = (num_blocks * block_rows * LANES) != n

    kernel = _make_kernel(n, block_rows, needs_mask)

    partials = pl.pallas_call(
        kernel,
        out_shape=jax.ShapeDtypeStruct((num_blocks, 3, LANES), jnp.float32),
        grid_spec=pltpu.PrefetchScalarGridSpec(
            num_scalar_prefetch=0,
            grid=(num_blocks,),
            in_specs=[
                pl.BlockSpec((block_rows, LANES), lambda i: (i, 0)),
                pl.BlockSpec((block_rows, LANES), lambda i: (i, 0)),
            ],
            out_specs=pl.BlockSpec((1, 3, LANES), lambda i: (i, 0, 0)),
        ),
        compiler_params=pltpu.CompilerParams(
            dimension_semantics=("parallel",),
            vmem_limit_bytes=32 * 1024 * 1024,
        ),
    )(x2, t2)

    totals = jnp.sum(partials, axis=(0, 2))                  # (3,) float32
    intersection, p_sum, t_sum = totals[0], totals[1], totals[2]
    smooth = jnp.float32(smooth)
    dice = (2.0 * intersection + smooth) / (p_sum + t_sum + smooth)
    return 1.0 - dice


def dice_loss_ref(inputs, targets, smooth=1.0):
    p = jax.nn.sigmoid(inputs.astype(jnp.float32))
    t = targets.astype(jnp.float32)
    intersection = jnp.sum(p * t)
    dice = (2.0 * intersection + smooth) / (jnp.sum(p) + jnp.sum(t) + smooth)
    return 1.0 - dice


if __name__ == "__main__":
    key = jax.random.PRNGKey(0)
    k1, k2 = jax.random.split(key)
    # NCHW logits + binary masks, consistent with the segmentation-style use.
    inputs = jax.random.normal(k1, (2, 4, 16, 16), dtype=jnp.float32)
    targets = (jax.random.uniform(k2, (2, 4, 16, 16)) > 0.5).astype(jnp.float32)

    out = dice_loss(inputs, targets, smooth=1)
    out = jax.block_until_ready(out)
    ref = dice_loss_ref(inputs, targets, smooth=1)
    assert jnp.allclose(out, ref, rtol=1e-5, atol=1e-6), (out, ref)

    # Also exercise the masked (non-aligned) path to make sure it stays correct.
    k3, k4 = jax.random.split(k1)
    inputs2 = jax.random.normal(k3, (3, 5, 13, 17), dtype=jnp.float32)
    targets2 = (jax.random.uniform(k4, (3, 5, 13, 17)) > 0.5).astype(jnp.float32)
    out2 = jax.block_until_ready(dice_loss(inputs2, targets2, smooth=1))
    ref2 = dice_loss_ref(inputs2, targets2, smooth=1)
    assert jnp.allclose(out2, ref2, rtol=1e-5, atol=1e-6), (out2, ref2)

    print("KERNEL_OK")
</pallas_src>

<mosaic_0001>
module attributes {stable_mosaic.version = 11 : i64} {
  func.func @kernel(%arg0: i32, %arg1: memref<8x128xf32, #tpu.memory_space<vmem>>, %arg2: memref<8x128xf32, #tpu.memory_space<vmem>>, %arg3: memref<1x3x128xf32, #tpu.memory_space<vmem>>) attributes {dimension_semantics = [#tpu.dimension_semantics<parallel>], iteration_bounds = array<i64: 2>, scalar_prefetch = 0 : i64, scratch_operands = 0 : i64, tpu.core_type = #tpu.core_type<tc>, window_params = [{transform_indices = @transform_0, window_bounds = array<i64: 8, 128>}, {transform_indices = @transform_1, window_bounds = array<i64: 8, 128>}, {transform_indices = @transform_2, window_bounds = array<i64: 1, 3, 128>}]} {
    %c0 = arith.constant 0 : index
    %c0_0 = arith.constant 0 : index
    %0 = vector.load %arg1[%c0, %c0_0] : memref<8x128xf32, #tpu.memory_space<vmem>>, vector<8x128xf32>
    %c0_1 = arith.constant 0 : index
    %c0_2 = arith.constant 0 : index
    %1 = vector.load %arg2[%c0_1, %c0_2] : memref<8x128xf32, #tpu.memory_space<vmem>>, vector<8x128xf32>
    %cst = arith.constant 5.000000e-01 : f32
    %2 = vector.broadcast %cst : f32 to vector<8x128xf32>
    %3 = arith.mulf %2, %0 : vector<8x128xf32>
    %4 = math.tanh %3 : vector<8x128xf32>
    %cst_3 = arith.constant 5.000000e-01 : f32
    %5 = vector.broadcast %cst_3 : f32 to vector<8x128xf32>
    %6 = arith.mulf %5, %4 : vector<8x128xf32>
    %cst_4 = arith.constant 5.000000e-01 : f32
    %7 = vector.broadcast %cst_4 : f32 to vector<8x128xf32>
    %8 = arith.addf %6, %7 : vector<8x128xf32>
    %9 = arith.mulf %8, %1 : vector<8x128xf32>
    %cst_5 = arith.constant dense<0.000000e+00> : vector<128xf32>
    %10 = vector.multi_reduction <add>, %9, %cst_5 [0] : vector<8x128xf32> to vector<128xf32>
    %11 = vector.shape_cast %10 : vector<128xf32> to vector<1x128xf32>
    %cst_6 = arith.constant dense<0.000000e+00> : vector<128xf32>
    %12 = vector.multi_reduction <add>, %8, %cst_6 [0] : vector<8x128xf32> to vector<128xf32>
    %13 = vector.shape_cast %12 : vector<128xf32> to vector<1x128xf32>
    %cst_7 = arith.constant dense<0.000000e+00> : vector<128xf32>
    %14 = vector.multi_reduction <add>, %1, %cst_7 [0] : vector<8x128xf32> to vector<128xf32>
    %15 = vector.shape_cast %14 : vector<128xf32> to vector<1x128xf32>
    %16 = tpu.concatenate %11, %13, %15 in 0 : vector<1x128xf32>, vector<1x128xf32>, vector<1x128xf32> -> vector<3x128xf32>
    %c0_8 = arith.constant 0 : index
    %c0_9 = arith.constant 0 : index
    %c0_10 = arith.constant 0 : index
    %17 = vector.load %arg3[%c0_8, %c0_9, %c0_10] : memref<1x3x128xf32, #tpu.memory_space<vmem>>, vector<1x3x128xf32>
    %18 = vector.shape_cast %17 : vector<1x3x128xf32> to vector<3x128xf32>
    %19 = vector.shape_cast %16 : vector<3x128xf32> to vector<1x3x128xf32>
    tpu.vector_store %arg3[%c0_8, %c0_9, %c0_10], %19 {strides = array<i32>} : memref<1x3x128xf32, #tpu.memory_space<vmem>>, vector<1x3x128xf32>,
    return
  }
  func.func @transform_0(%arg0: i32) -> (i32, i32) {
    %c0_i32 = arith.constant 0 : i32
    %c0_i32_0 = arith.constant 0 : i32
    return %arg0, %c0_i32 : i32, i32
  }
  func.func @transform_1(%arg0: i32) -> (i32, i32) {
    %c0_i32 = arith.constant 0 : i32
    %c0_i32_0 = arith.constant 0 : i32
    return %arg0, %c0_i32 : i32, i32
  }
  func.func @transform_2(%arg0: i32) -> (i32, i32, i32) {
    %c0_i32 = arith.constant 0 : i32
    %c0_i32_0 = arith.constant 0 : i32
    %c0_i32_1 = arith.constant 0 : i32
    return %arg0, %c0_i32, %c0_i32_0 : i32, i32, i32
  }
}

</mosaic_0001>

<llo_original>
// kernel: tpu_custom_call.1
$region0: #{tpu_custom_call.1}
  #allocation0 [shape = 'u32[]', space=smem, size = 0x4, offset = 0x4, fixed_abs, tag = 'smem constant byte address 0x4 - core index']
  #allocation1 [shape = 'u32[72,128]{1,0:T(1,128)}', space=vmem, size = 0x9000, scoped, tag = 'internal scratch']
  %s0 = inlined_call_operand.hbm [shape: f32[16,128], index: 0, kind: input, shape index: {}]
  %s1 = inlined_call_operand.hbm [shape: f32[16,128], index: 1, kind: input, shape index: {}]
  %s2 = inlined_call_operand.vmem [shape: f32[2,3,128], index: 2, kind: output, shape index: {}]
  %s3 = sld [smem:[#allocation0]]
  $region49: #{tpu_custom_call.1} parent=0
    _
  %s5 = ssub.s32 1, %s3
  %s6 = scalar_select 0, %s5, %s3
  $region1: #{tpu_custom_call.1} parent=0
    #allocation2 [shape = 'u8[8192]{0}', space=vmem, size = 0x2000, scoped, tag = 'input window, operand 0']
    #allocation3 [shape = 's32[2]{0}', space=sflag, size = 0x8, scoped, tag = 'scoped memory for tpu_custom_call.1']
    #allocation4 [shape = 'u8[8192]{0}', space=vmem, size = 0x2000, scoped, tag = 'input window, operand 1']
    #allocation5 [shape = 's32[2]{0}', space=sflag, size = 0x8, scoped, tag = 'scoped memory for tpu_custom_call.1']
    %7 = vsyncpa [#allocation3], 0
    %s8 = scalar_lea.sflag [#allocation3], 1
    %9 = vsyncpa %s8, 0
    %10 = vsyncpa [#allocation5], 0
    %s11 = scalar_lea.sflag [#allocation5], 1
    %12 = vsyncpa %s11, 0
    loop: start=0, step=1, limit=4
    $region2: #{tpu_custom_call.1} parent=1 // loop_pre_header
      _
    $region3: #{tpu_custom_call.1} parent=1 // loop_header
      %s14 = sphi 0, %s18
      %p15 = scmp.ge.s32.totalorder %s14, 4
      %s24 = sphi 0, %s26
      %s27 = sphi 0, %s24
      %s28 = sphi 0, %s27
      %s44 = sphi 0, %s28
      %s50 = sphi 0, %s52
      %s53 = sphi 0, %s50
      %s54 = sphi 0, %s53
      %s70 = sphi 0, %s54
      %s76 = sphi 0, %s78
      %s79 = sphi 0, %s76
      %s80 = sphi 0, %s79
      %s96 = sphi 0, %s80
    $region4: #{tpu_custom_call.1} parent=1 // loop_header_branch
      %17 = sbr.rel (%p15) target = $region8
    $region5: #{tpu_custom_call.1} parent=1 // loop_body
      %s19 = ssub.s32 %s14, 1
      %s20 = ssub.s32 %s14, 2
      %s21 = sadd.s32 %s14, 1
      %s22 = ssub.s32 %s14, %s21
      %p23 = scmp.eq.s32.totalorder %s22, 0
      %s25 = sadd.s32 %s24, 1
      %s26 = scalar_select %p23, %s24, %s25
      %p29 = pneg %p23
      %p30 = scmp.eq.s32.totalorder %s14, 1
      %p31 = por %p29, %p30
      %p32 = scmp.ne.s32.totalorder %s24, %s27
      %p33 = scmp.eq.s32.totalorder %s14, 0
      %p34 = por %p32, %p33
      %p35 = scmp.ne.s32.totalorder %s24, %s27
      %p36 = scmp.eq.s32.totalorder %s19, 1
      %p37 = por %p35, %p36
      %p38 = scmp.ne.s32.totalorder %s27, %s28
      %p39 = scmp.eq.s32.totalorder %s19, 0
      %p40 = por %p38, %p39
      %p41 = scmp.ne.s32.totalorder %s27, %s28
      %p42 = scmp.eq.s32.totalorder %s20, 1
      %p43 = por %p41, %p42
      %p45 = scmp.ne.s32.totalorder %s28, %s44
      %p46 = scmp.eq.s32.totalorder %s20, 0
      %p47 = por %p45, %p46
      %s48 = ssub.s32 %s14, %s21
      %p49 = scmp.eq.s32.totalorder %s48, 0
      %s51 = sadd.s32 %s50, 1
      %s52 = scalar_select %p49, %s50, %s51
      %p55 = pneg %p49
      %p56 = scmp.eq.s32.totalorder %s14, 1
      %p57 = por %p55, %p56
      %p58 = scmp.ne.s32.totalorder %s50, %s53
      %p59 = scmp.eq.s32.totalorder %s14, 0
      %p60 = por %p58, %p59
      %p61 = scmp.ne.s32.totalorder %s50, %s53
      %p62 = scmp.eq.s32.totalorder %s19, 1
      %p63 = por %p61, %p62
      %p64 = scmp.ne.s32.totalorder %s53, %s54
      %p65 = scmp.eq.s32.totalorder %s19, 0
      %p66 = por %p64, %p65
      %p67 = scmp.ne.s32.totalorder %s53, %s54
      %p68 = scmp.eq.s32.totalorder %s20, 1
      %p69 = por %p67, %p68
      %p71 = scmp.ne.s32.totalorder %s54, %s70
      %p72 = scmp.eq.s32.totalorder %s20, 0
      %p73 = por %p71, %p72
      %s74 = ssub.s32 %s14, %s21
      %p75 = scmp.eq.s32.totalorder %s74, 0
      %s77 = sadd.s32 %s76, 1
      %s78 = scalar_select %p75, %s76, %s77
      %p81 = pneg %p75
      %p82 = scmp.eq.s32.totalorder %s14, 1
      %p83 = por %p81, %p82
      %p84 = scmp.ne.s32.totalorder %s76, %s79
      %p85 = scmp.eq.s32.totalorder %s14, 0
      %p86 = por %p84, %p85
      %p87 = scmp.ne.s32.totalorder %s76, %s79
      %p88 = scmp.eq.s32.totalorder %s19, 1
      %p89 = por %p87, %p88
      %p90 = scmp.ne.s32.totalorder %s79, %s80
      %p91 = scmp.eq.s32.totalorder %s19, 0
      %p92 = por %p90, %p91
      %p93 = scmp.ne.s32.totalorder %s79, %s80
      %p94 = scmp.eq.s32.totalorder %s20, 1
      %p95 = por %p93, %p94
      %p97 = scmp.ne.s32.totalorder %s80, %s96
      %p98 = scmp.eq.s32.totalorder %s20, 0
      %p99 = por %p97, %p98
      %p100 = scmp.le.s32.totalorder 1, %s14
      %p101 = scmp.lt.s32.totalorder %s14, 3
      %p102 = pnand %p100, %p101
      %p103 = pneg %p102
      // Predicated region
      $region9: #{tpu_custom_call.1} parent=5 // pred_check
        _
      $region10: #{tpu_custom_call.1} parent=5 // pred_check_branch
        %105 = sbr.rel (%p102) target = $region12
      $region11: #{tpu_custom_call.1} parent=5 // pred_region
        %s106 = ssub.s32 %s14, 1
      $region12: #{tpu_custom_call.1} parent=5 // pred_fallthru
        _
      %p107 = scmp.lt.s32.totalorder %s14, 2
      // Predicated region
      $region13: #{tpu_custom_call.1} parent=5 // pred_check
        %p108 = pneg %p107
      $region14: #{tpu_custom_call.1} parent=5 // pred_check_branch
        %110 = sbr.rel (%p108) target = $region16
      $region15: #{tpu_custom_call.1} parent=5 // pred_region
        // Predicated region
        $region17: #{tpu_custom_call.1} parent=15 // pred_check
          %p111 = pneg %p34
        $region18: #{tpu_custom_call.1} parent=15 // pred_check_branch
          %113 = sbr.rel (%p111) target = $region20
        $region19: #{tpu_custom_call.1} parent=15 // pred_region
          %s114 = sand.u32 %s24, 1
          %s115 = scalar_lea.sflag [#allocation3], %s114
          %s116 = sand.u32 %s24, 1
          %s117 = smul.addr %s116, 8
          %s118 = scalar_lea.vmem [#allocation2], %s117
          %120 = vsyncadd %s115, 0
          %s121 = smul.addr %s14, 8
          %s122 = scalar_lea.hbm %s0, %s121
          %s124 = sshll.u32 %s122, 4
          %s125 = int_to_ptr.hbm [resolvable:$true] %s124
          %s126 = sshll.u32 %s118, 4
          %s127 = int_to_ptr.vmem [resolvable:$true] %s126
          %129 = dma.hbm_to_vmem [thread:$0]  %s125, 128, %s127, %s115
        $region20: #{tpu_custom_call.1} parent=15 // pred_fallthru
          _
        // Predicated region
        $region21: #{tpu_custom_call.1} parent=15 // pred_check
          %p130 = pneg %p60
        $region22: #{tpu_custom_call.1} parent=15 // pred_check_branch
          %132 = sbr.rel (%p130) target = $region24
        $region23: #{tpu_custom_call.1} parent=15 // pred_region
          %s133 = sand.u32 %s50, 1
          %s134 = scalar_lea.sflag [#allocation5], %s133
          %s135 = sand.u32 %s50, 1
          %s136 = smul.addr %s135, 8
          %s137 = scalar_lea.vmem [#allocation4], %s136
          %139 = vsyncadd %s134, 0
          %s140 = smul.addr %s14, 8
          %s141 = scalar_lea.hbm %s1, %s140
          %s143 = sshll.u32 %s141, 4
          %s144 = int_to_ptr.hbm [resolvable:$true] %s143
          %s145 = sshll.u32 %s137, 4
          %s146 = int_to_ptr.vmem [resolvable:$true] %s145
          %148 = dma.hbm_to_vmem [thread:$0]  %s144, 128, %s146, %s134
        $region24: #{tpu_custom_call.1} parent=15 // pred_fallthru
          _
      $region16: #{tpu_custom_call.1} parent=5 // pred_fallthru
        _
      %p149 = scmp.le.s32.totalorder 1, %s14
      %p150 = scmp.lt.s32.totalorder %s14, 3
      %p151 = pnand %p149, %p150
      %p152 = pneg %p151
      // Predicated region
      $region25: #{tpu_custom_call.1} parent=5 // pred_check
        _
      $region26: #{tpu_custom_call.1} parent=5 // pred_check_branch
        %154 = sbr.rel (%p151) target = $region28
      $region27: #{tpu_custom_call.1} parent=5 // pred_region
        %s155 = ssub.s32 %s14, 1
        %s156 = sand.u32 %s27, 1
        %s157 = scalar_lea.sflag [#allocation3], %s156
        %s158 = sand.u32 %s27, 1
        %s159 = smul.addr %s158, 8
        %s160 = scalar_lea.vmem [#allocation2], %s159
        // Predicated region
        $region29: #{tpu_custom_call.1} parent=27 // pred_check
          %p161 = pneg %p40
        $region30: #{tpu_custom_call.1} parent=27 // pred_check_branch
          %163 = sbr.rel (%p161) target = $region32
        $region31: #{tpu_custom_call.1} parent=27 // pred_region
          %165 = dma.done %s157, 128
        $region32: #{tpu_custom_call.1} parent=27 // pred_fallthru
          _
        %s166 = sand.u32 %s53, 1
        %s167 = scalar_lea.sflag [#allocation5], %s166
        %s168 = sand.u32 %s53, 1
        %s169 = smul.addr %s168, 8
        %s170 = scalar_lea.vmem [#allocation4], %s169
        // Predicated region
        $region33: #{tpu_custom_call.1} parent=27 // pred_check
          %p171 = pneg %p66
        $region34: #{tpu_custom_call.1} parent=27 // pred_check_branch
          %173 = sbr.rel (%p171) target = $region36
        $region35: #{tpu_custom_call.1} parent=27 // pred_region
          %175 = dma.done %s167, 128
        $region36: #{tpu_custom_call.1} parent=27 // pred_fallthru
          _
        %s176 = sand.u32 %s27, 1
        %s177 = scalar_lea.sflag [#allocation3], %s176
        %s178 = sand.u32 %s27, 1
        %s179 = smul.addr %s178, 8
        %s180 = scalar_lea.vmem [#allocation2], %s179
        %p181 = pneg %p40
        %p182 = pneg %p37
        %s183 = sand.u32 %s53, 1
        %s184 = scalar_lea.sflag [#allocation5], %s183
        %s185 = sand.u32 %s53, 1
        %s186 = smul.addr %s185, 8
        %s187 = scalar_lea.vmem [#allocation4], %s186
        %p188 = pneg %p66
        %p189 = pneg %p63
        %p190 = pneg %p92
        %p191 = pneg %p89
        %p192 = scmp.lt.s32.totalorder %s19, 1
        %s193 = scalar_select %p192, %s19, 1
        %s194 = smul.addr %s193, 4
        %s195 = scalar_lea.vmem %s2, %s194
        %p196 = scmp.lt.s32.totalorder %s19, 1
        %s197 = scalar_select %p196, %s19, 1
        %s198 = smul.addr %s197, 4
        %s199 = scalar_lea.vmem %s2, %s198
        %v200 = vld [vmem:[%s160] sm:$0xff]
        %v201 = vld [vmem:[%s170] sm:$0xff]
        %v202 = vmul.f32 %v200, 0.5
        %v203 = vtanh.pop %v202
        %v204 = vmul.f32 %v203, 0.5
        %v205 = vadd.f32 %v204, 0.5
        %v206 = vmul.f32 %v205, %v201
        %v207 = vrot.slane %v206, 4
        %v208 = vadd.f32 %v206, %v207
        %v209 = vrot.slane %v208, 2
        %v210 = vadd.f32 %v208, %v209
        %v211 = vrot.slane %v210, 1
        %v212 = vadd.f32 %v210, %v211
        %v213 = vrot.slane %v205, 4
        %v214 = vadd.f32 %v205, %v213
        %v215 = vrot.slane %v214, 2
        %v216 = vadd.f32 %v214, %v215
        %v217 = vrot.slane %v216, 1
        %v218 = vadd.f32 %v216, %v217
        %v219 = vrot.slane %v201, 4
        %v220 = vadd.f32 %v201, %v219
        %v221 = vrot.slane %v220, 2
        %v222 = vadd.f32 %v220, %v221
        %v223 = vrot.slane %v222, 1
        %v224 = vadd.f32 %v222, %v223
        %vm225 = vcmask 1040384
        %v226 = vsel %vm225, %v212, %v218
        %vm227 = vcmask 1041408
        %v228 = vsel %vm227, %v226, %v224
        %229 = vst [vmem:[%s199] sm:$0x7] %v228
        %p230 = scmp.lt.s32.totalorder %s19, 1
        %s231 = scalar_select %p230, %s19, 1
        %s232 = smul.addr %s231, 4
        %s233 = scalar_lea.vmem %s2, %s232
        // Predicated region
        $region37: #{tpu_custom_call.1} parent=27 // pred_check
          %p234 = pneg %p89
        $region38: #{tpu_custom_call.1} parent=27 // pred_check_branch
          %236 = sbr.rel (%p234) target = $region40
        $region39: #{tpu_custom_call.1} parent=27 // pred_region
          _
        $region40: #{tpu_custom_call.1} parent=27 // pred_fallthru
          _
      $region28: #{tpu_custom_call.1} parent=5 // pred_fallthru
        _
      %p237 = scmp.le.s32.totalorder 2, %s14
      // Predicated region
      $region41: #{tpu_custom_call.1} parent=5 // pred_check
        %p238 = pneg %p237
      $region42: #{tpu_custom_call.1} parent=5 // pred_check_branch
        %240 = sbr.rel (%p238) target = $region44
      $region43: #{tpu_custom_call.1} parent=5 // pred_region
        %s241 = ssub.s32 %s14, 2
        // Predicated region
        $region45: #{tpu_custom_call.1} parent=43 // pred_check
          %p242 = pneg %p95
        $region46: #{tpu_custom_call.1} parent=43 // pred_check_branch
          %244 = sbr.rel (%p242) target = $region48
        $region47: #{tpu_custom_call.1} parent=43 // pred_region
          %p245 = scmp.lt.s32.totalorder %s20, 1
          %s246 = scalar_select %p245, %s20, 1
          %s247 = smul.addr %s246, 4
          %s248 = scalar_lea.vmem %s2, %s247
        $region48: #{tpu_custom_call.1} parent=43 // pred_fallthru
          _
      $region44: #{tpu_custom_call.1} parent=5 // pred_fallthru
        _
    $region6: #{tpu_custom_call.1} parent=1 // loop_footer
      %s18 = sadd.s32 1, %s14
    $region7: #{tpu_custom_call.1} parent=1 // loop_footer_branch
      %13 = sbr.rel target = $region3
    $region8: #{tpu_custom_call.1} parent=1 // loop_exit
      _
    %249 = vsyncpa [#allocation3], 1
    %s250 = scalar_lea.sflag [#allocation3], 1
    %251 = vsyncpa %s250, 1
    %252 = vsyncpa [#allocation5], 1
    %s253 = scalar_lea.sflag [#allocation5], 1
    %254 = vsyncpa %s253, 1

</llo_original>
